<compile_context>
chip_gen: v5e
topology: v5e:2x2
jax: 0.10.0
libtpu: 0.0.40
codegen_flags: <defaults>
</compile_context>

<pallas_src>
import functools

import jax
import jax.numpy as jnp
from jax.experimental import pallas as pl
from jax.experimental.pallas import tpu as pltpu

GAMMA = 2          # module default
EPS = 1e-07        # module default (unused in forward, kept for parity)

MAX_BLOCK_ELEMS = 512 * 1024   # 2 MiB f32 per block (v5e-friendly; raise on v7x)
NUM_CORE_SPLITS = 2            # leading "parallel" axis for v7x's 2 TensorCores

# Lookup table implementing convert_target_to_target_format (int8: 0/1 only).
_TARGET_TABLE_I8 = jnp.array(
    [[1, 0],   # class 0
     [1, 1],   # class 1
     [0, 1],   # class 2
     [0, 0]],  # class 3
    dtype=jnp.int8,
)


def _l2loss_kernel(x_ref, t_ref, o_ref, acc_ref, *, gamma, rows, tile_rows,
                   lanes, blocks_per_core, need_mask):
    """Streaming focal-L2 reduction.

    x_ref : (tile_rows, lanes) native-dtype block (predictions, flattened)
    t_ref : (tile_rows, lanes) int8 block (targets 0/1, flattened)
    o_ref : (1, 8, 128) f32 per-core partial-sum output block
    acc_ref: (tile_rows, lanes) f32 VMEM accumulator (resident per core)
    """
    b = pl.program_id(1)

    @pl.when(b == 0)
    def _():
        acc_ref[...] = jnp.zeros_like(acc_ref)

    x = x_ref[...].astype(jnp.float32)     # in-kernel upcast (bf16/f32 inputs)
    t = t_ref[...].astype(jnp.float32)
    d = x - t

    if need_mask:
        # Zero contributions from (a) garbage rows of a partial boundary block
        # and (b) duplicated clamped blocks when the grid over-covers.
        logical_block = pl.program_id(0) * blocks_per_core + b
        row_idx = (logical_block * tile_rows
                   + jax.lax.broadcasted_iota(jnp.int32, (tile_rows, lanes), 0))
        d = jnp.where(row_idx < rows, d, 0.0)

    logp = d * d                           # MSELoss(reduction='none')
    p = jnp.exp(-logp)                     # EUP transcendental
    q = 1.0 - p
    if gamma == 2:                         # default path: one extra VALU mul
        focal = q * q
    elif isinstance(gamma, int) and gamma >= 0:
        focal = q ** gamma                 # static integer pow -> repeated muls
    else:
        focal = jnp.power(q, gamma)        # generic (log+exp) fallback

    acc_ref[...] += focal * logp           # pure VALU, hides under DMA

    @pl.when(b == blocks_per_core - 1)
    def _():
        total = jnp.sum(acc_ref[...])      # single XLU reduce per core
        o_ref[...] = jnp.full((1, 8, 128), total, dtype=jnp.float32)


def l2_loss(inputs, targets, gamma=GAMMA, eps=EPS):
    """Pallas implementation of L2Loss.forward.

    inputs  : (N, 2) float array (f32 or bf16 predictions, used as-is)
    targets : (N,)   int array of class labels in {0,1,2,3}
    returns : scalar float32 loss
    """
    del eps  # unused in the reference forward pass
    n, c = inputs.shape
    assert c == 2, "L2Loss expects 2-wide inputs/targets"
    if n == 0:
        return jnp.float32(jnp.nan)        # torch .mean() of empty -> nan

    flat_len = n * c
    # Glue: label -> 2-wide 0/1 target format, kept in int8 to minimize HBM
    # traffic (upcast to f32 inside the kernel).
    target_i8 = _TARGET_TABLE_I8[targets.astype(jnp.int32)]      # (N, 2) int8

    # Widest lane-dense view that is a zero-copy reshape of the flat stream.
    lanes = None
    for w in (512, 256, 128):
        if flat_len % w == 0:
            lanes = w
            break

    if lanes is None:
        # Rare misaligned case (N % 64 != 0): one small zero pad (<128 elems).
        # Identical zero pads in x and t => (x - t) = 0 => loss contribution 0.
        lanes = 128
        pad = (-flat_len) % 128
        x2d = jnp.pad(inputs.reshape(-1), (0, pad)).reshape(-1, lanes)
        t2d = jnp.pad(target_i8.reshape(-1), (0, pad)).reshape(-1, lanes)
    else:
        x2d = inputs.reshape(-1, lanes)          # zero-copy bitcast view
        t2d = target_i8.reshape(-1, lanes)       # zero-copy bitcast view

    rows = x2d.shape[0]
    max_rows = max(32, (MAX_BLOCK_ELEMS // lanes) // 32 * 32)   # int8/bf16 tiles
    tile_rows = rows if rows <= max_rows else max_rows
    num_blocks = pl.cdiv(rows, tile_rows)

    ncores = NUM_CORE_SPLITS if num_blocks > 1 else 1
    blocks_per_core = pl.cdiv(num_blocks, ncores)
    need_mask = (rows % tile_rows != 0) or (num_blocks != ncores * blocks_per_core)

    def idx_map(p, b):
        # Clamp so duplicated (over-coverage) steps re-read the last real block;
        # their contribution is zeroed by the in-kernel row mask.
        return (jnp.minimum(p * blocks_per_core + b, num_blocks - 1), 0)

    kernel = functools.partial(
        _l2loss_kernel, gamma=gamma, rows=rows, tile_rows=tile_rows,
        lanes=lanes, blocks_per_core=blocks_per_core, need_mask=need_mask)

    partials = pl.pallas_call(
        kernel,
        out_shape=jax.ShapeDtypeStruct((ncores, 8, 128), jnp.float32),
        grid=(ncores, blocks_per_core),
        in_specs=[
            pl.BlockSpec((tile_rows, lanes), idx_map),   # x (native dtype)
            pl.BlockSpec((tile_rows, lanes), idx_map),   # targets (int8)
        ],
        out_specs=pl.BlockSpec((1, 8, 128), lambda p, b: (p, 0, 0)),
        scratch_shapes=[pltpu.VMEM((tile_rows, lanes), jnp.float32)],
        compiler_params=pltpu.CompilerParams(
            dimension_semantics=("parallel", "arbitrary"),
            vmem_limit_bytes=32 * 1024 * 1024,
        ),
    )(x2d, t2d)

    # Combine per-core partials and apply the mean divisor (original N*2).
    return partials[:, 0, 0].sum() / jnp.float32(flat_len)


def _ref_l2_loss(inputs, targets, gamma=GAMMA):
    """Pure-JAX reference of the PyTorch forward."""
    table = jnp.array([[1., 0.], [1., 1.], [0., 1.], [0., 0.]], jnp.float32)
    t = table[targets]
    logp = (inputs.astype(jnp.float32) - t) ** 2
    p = jnp.exp(-logp)
    return jnp.mean((1.0 - p) ** gamma * logp)


if __name__ == "__main__":
    key = jax.random.PRNGKey(0)
    k1, k2, k3, k4 = jax.random.split(key, 4)

    # Small deterministic example: batch of 8 predictions, 2 logits each.
    N = 8
    x = jax.random.normal(k1, (N, 2), dtype=jnp.float32)
    tgt = jax.random.randint(k2, (N,), 0, 4, dtype=jnp.int32)

    loss = l2_loss(x, tgt)
    jax.block_until_ready(loss)
    ref = _ref_l2_loss(x, tgt)
    assert jnp.allclose(loss, ref, rtol=1e-5, atol=1e-6), (loss, ref)

    # Larger case: exercises zero-copy reshape, multi-block accumulation,
    # partial-last-block masking, and the 2-way core split.
    N2 = 1_000_000
    x2 = jax.random.normal(k3, (N2, 2), dtype=jnp.float32)
    tgt2 = jax.random.randint(k4, (N2,), 0, 4, dtype=jnp.int32)

    loss2 = l2_loss(x2, tgt2)
    jax.block_until_ready(loss2)
    ref2 = _ref_l2_loss(x2, tgt2)
    assert jnp.allclose(loss2, ref2, rtol=1e-4, atol=1e-6), (loss2, ref2)

    # Native-bf16 input path (no wrapper cast; upcast happens in-kernel).
    x2_bf16 = x2.astype(jnp.bfloat16)
    loss3 = l2_loss(x2_bf16, tgt2)
    jax.block_until_ready(loss3)
    ref3 = _ref_l2_loss(x2_bf16, tgt2)
    assert jnp.allclose(loss3, ref3, rtol=1e-4, atol=1e-6), (loss3, ref3)

    print("KERNEL_OK")
</pallas_src>

<mosaic_0001>
module attributes {stable_mosaic.version = 11 : i64} {
  func.func @_l2loss_kernel(%arg0: i32, %arg1: i32, %arg2: memref<1x128xf32, #tpu.memory_space<vmem>>, %arg3: memref<1x128xi8, #tpu.memory_space<vmem>>, %arg4: memref<1x8x128xf32, #tpu.memory_space<vmem>>, %arg5: memref<1x128xf32, #tpu.memory_space<vmem>>) attributes {dimension_semantics = [#tpu.dimension_semantics<parallel>, #tpu.dimension_semantics<arbitrary>], iteration_bounds = array<i64: 1, 1>, scalar_prefetch = 0 : i64, scratch_operands = 1 : i64, tpu.core_type = #tpu.core_type<tc>, window_params = [{transform_indices = @transform_0, window_bounds = array<i64: 1, 128>}, {transform_indices = @transform_1, window_bounds = array<i64: 1, 128>}, {transform_indices = @transform_2, window_bounds = array<i64: 1, 8, 128>}]} {
    %c0_i32 = arith.constant 0 : i32
    %0 = arith.cmpi eq, %arg1, %c0_i32 : i32
    %1 = arith.extui %0 : i1 to i32
    %c0_i32_0 = arith.constant 0 : i32
    %2 = arith.cmpi ne, %1, %c0_i32_0 : i32
    scf.if %2 {
      %cst_11 = arith.constant 0.000000e+00 : f32
      %21 = vector.broadcast %cst_11 : f32 to vector<1x128xf32>
      %c0_12 = arith.constant 0 : index
      %c0_13 = arith.constant 0 : index
      %22 = vector.load %arg5[%c0_12, %c0_13] : memref<1x128xf32, #tpu.memory_space<vmem>>, vector<1x128xf32>
      tpu.vector_store %arg5[%c0_12, %c0_13], %21 {strides = array<i32>} : memref<1x128xf32, #tpu.memory_space<vmem>>, vector<1x128xf32>,
    } else {
    }
    %c0 = arith.constant 0 : index
    %c0_1 = arith.constant 0 : index
    %3 = vector.load %arg2[%c0, %c0_1] : memref<1x128xf32, #tpu.memory_space<vmem>>, vector<1x128xf32>
    %c0_2 = arith.constant 0 : index
    %c0_3 = arith.constant 0 : index
    %4 = vector.load %arg3[%c0_2, %c0_3] : memref<1x128xi8, #tpu.memory_space<vmem>>, vector<1x128xi8>
    %5 = arith.sitofp %4 : vector<1x128xi8> to vector<1x128xf32>
    %6 = arith.subf %3, %5 : vector<1x128xf32>
    %7 = arith.mulf %6, %6 : vector<1x128xf32>
    %cst = arith.constant 0.000000e+00 : f32
    %8 = vector.broadcast %cst : f32 to vector<1x128xf32>
    %9 = arith.subf %8, %7 : vector<1x128xf32>
    %10 = math.exp %9 : vector<1x128xf32>
    %cst_4 = arith.constant 1.000000e+00 : f32
    %11 = vector.broadcast %cst_4 : f32 to vector<1x128xf32>
    %12 = arith.subf %11, %10 : vector<1x128xf32>
    %13 = arith.mulf %12, %12 : vector<1x128xf32>
    %c0_5 = arith.constant 0 : index
    %c0_6 = arith.constant 0 : index
    %14 = vector.load %arg5[%c0_5, %c0_6] : memref<1x128xf32, #tpu.memory_space<vmem>>, vector<1x128xf32>
    %15 = arith.mulf %13, %7 : vector<1x128xf32>
    %16 = arith.addf %14, %15 : vector<1x128xf32>
    %c0_7 = arith.constant 0 : index
    %c0_8 = arith.constant 0 : index
    %17 = vector.load %arg5[%c0_7, %c0_8] : memref<1x128xf32, #tpu.memory_space<vmem>>, vector<1x128xf32>
    tpu.vector_store %arg5[%c0_7, %c0_8], %16 {strides = array<i32>} : memref<1x128xf32, #tpu.memory_space<vmem>>, vector<1x128xf32>,
    %c0_i32_9 = arith.constant 0 : i32
    %18 = arith.cmpi eq, %arg1, %c0_i32_9 : i32
    %19 = arith.extui %18 : i1 to i32
    %c0_i32_10 = arith.constant 0 : i32
    %20 = arith.cmpi ne, %19, %c0_i32_10 : i32
    scf.if %20 {
      %c0_11 = arith.constant 0 : index
      %c0_12 = arith.constant 0 : index
      %21 = vector.load %arg5[%c0_11, %c0_12] : memref<1x128xf32, #tpu.memory_space<vmem>>, vector<1x128xf32>
      %22 = vector.shape_cast %21 : vector<1x128xf32> to vector<1x1x128xf32>
      %cst_13 = arith.constant dense<0.000000e+00> : vector<1xf32>
      %23 = vector.multi_reduction <add>, %22, %cst_13 [1, 2] : vector<1x1x128xf32> to vector<1xf32>
      %24 = vector.shape_cast %23 : vector<1xf32> to vector<1x1x1xf32>
      %25 = vector.extract %24[0, 0, 0] : f32 from vector<1x1x1xf32>
      %26 = vector.broadcast %25 : f32 to vector<1x8x128xf32>
      %c0_14 = arith.constant 0 : index
      %c0_15 = arith.constant 0 : index
      %c0_16 = arith.constant 0 : index
      %27 = vector.load %arg4[%c0_14, %c0_15, %c0_16] : memref<1x8x128xf32, #tpu.memory_space<vmem>>, vector<1x8x128xf32>
      tpu.vector_store %arg4[%c0_14, %c0_15, %c0_16], %26 {strides = array<i32>} : memref<1x8x128xf32, #tpu.memory_space<vmem>>, vector<1x8x128xf32>,
    } else {
    }
    return
  }
  func.func @transform_0(%arg0: i32, %arg1: i32) -> (i32, i32) {
    %c1_i32 = arith.constant 1 : i32
    %0 = arith.muli %arg0, %c1_i32 : i32
    %1 = arith.addi %0, %arg1 : i32
    %c0_i32 = arith.constant 0 : i32
    %2 = arith.minsi %1, %c0_i32 : i32
    %c0_i32_0 = arith.constant 0 : i32
    %c0_i32_1 = arith.constant 0 : i32
    return %2, %c0_i32_0 : i32, i32
  }
  func.func @transform_1(%arg0: i32, %arg1: i32) -> (i32, i32) {
    %c1_i32 = arith.constant 1 : i32
    %0 = arith.muli %arg0, %c1_i32 : i32
    %1 = arith.addi %0, %arg1 : i32
    %c0_i32 = arith.constant 0 : i32
    %2 = arith.minsi %1, %c0_i32 : i32
    %c0_i32_0 = arith.constant 0 : i32
    %c0_i32_1 = arith.constant 0 : i32
    return %2, %c0_i32_0 : i32, i32
  }
  func.func @transform_2(%arg0: i32, %arg1: i32) -> (i32, i32, i32) {
    %c0_i32 = arith.constant 0 : i32
    %c0_i32_0 = arith.constant 0 : i32
    %c0_i32_1 = arith.constant 0 : i32
    return %arg0, %c0_i32, %c0_i32_0 : i32, i32, i32
  }
}

</mosaic_0001>

<llo_original>
// kernel: tpu_custom_call.1
$region0: #{tpu_custom_call.1}
  #allocation0 [shape = 'u32[]', space=smem, size = 0x4, offset = 0x4, fixed_abs, tag = 'smem constant byte address 0x4 - core index']
  #allocation1 [shape = 'u32[72,128]{1,0:T(1,128)}', space=vmem, size = 0x9000, scoped, tag = 'internal scratch']
  #allocation2 [shape = 'f32[1,128]{1,0:T(1,128)}', space=vmem, size = 0x200, scoped, tag = 'scratch operand']
  %s0 = inlined_call_operand.hbm [shape: f32[1,128], index: 0, kind: input, shape index: {}]
  %s1 = inlined_call_operand.hbm [shape: s8[1,128], index: 1, kind: input, shape index: {}]
  %s2 = inlined_call_operand.hbm [shape: f32[1,8,128], index: 2, kind: output, shape index: {}]
  %s3 = sld [smem:[#allocation0]]
  $region34: #{tpu_custom_call.1} parent=0
    _
  %s5 = ssub.s32 1, %s3
  %s6 = scalar_select 0, %s5, %s3
  $region1: #{tpu_custom_call.1} parent=0
    #allocation3 [shape = 'u8[512]{0}', space=vmem, size = 0x400, scoped, tag = 'input window, operand 0, single buffered']
    #allocation4 [shape = 's32[1]{0}', space=sflag, size = 0x4, scoped, tag = 'scoped memory for tpu_custom_call.1']
    #allocation5 [shape = 's32[1]{0}', space=sflag, size = 0x4, scoped, tag = 'scoped memory for tpu_custom_call.1']
    #allocation6 [shape = 'u8[512]{0}', space=vmem, size = 0x400, scoped, tag = 'input window, operand 1, single buffered']
    #allocation7 [shape = 's32[1]{0}', space=sflag, size = 0x4, scoped, tag = 'scoped memory for tpu_custom_call.1']
    #allocation8 [shape = 'u8[4096]{0}', space=vmem, size = 0x1000, scoped, tag = 'output window, operand 0, single buffered']
    %7 = vsyncpa [#allocation4], 0
    %8 = vsyncpa [#allocation7], 0
    %9 = vsyncpa [#allocation5], 0
    // Predicated region
    $region2: #{tpu_custom_call.1} parent=1 // pred_check
      _
    $region3: #{tpu_custom_call.1} parent=1 // pred_check_branch
      %11 = sbr.rel (0) target = $region5
    $region4: #{tpu_custom_call.1} parent=1 // pred_region
      %s12 = sadd.s32 0, 0
      %p13 = scmp.lt.s32.totalorder %s12, 0
      %s14 = scalar_select %p13, %s12, 0
      %16 = vsyncadd [#allocation4], 0
      %s17 = scalar_lea.hbm %s0, %s14
      %s19 = sshll.u32 %s17, 4
      %s20 = int_to_ptr.hbm [resolvable:$true] %s19
      %s21 = sshll.u32 [#allocation3], 4
      %s22 = int_to_ptr.vmem [resolvable:$true] %s21
      %24 = dma.hbm_to_vmem [thread:$0]  %s20, 16, %s22, [#allocation4]
    $region5: #{tpu_custom_call.1} parent=1 // pred_fallthru
      _
    // Predicated region
    $region6: #{tpu_custom_call.1} parent=1 // pred_check
      _
    $region7: #{tpu_custom_call.1} parent=1 // pred_check_branch
      %26 = sbr.rel (0) target = $region9
    $region8: #{tpu_custom_call.1} parent=1 // pred_region
      %s27 = sadd.s32 0, 0
      %p28 = scmp.lt.s32.totalorder %s27, 0
      %s29 = scalar_select %p28, %s27, 0
      %31 = vsyncadd [#allocation7], 0
      %s32 = scalar_lea.hbm %s1, %s29
      %s34 = sshll.u32 %s32, 4
      %s35 = int_to_ptr.hbm [resolvable:$true] %s34
      %s36 = sshll.u32 [#allocation6], 4
      %s37 = int_to_ptr.vmem [resolvable:$true] %s36
      %39 = dma.hbm_to_vmem [thread:$0]  %s35, 16, %s37, [#allocation7]
    $region9: #{tpu_custom_call.1} parent=1 // pred_fallthru
      _
    // Predicated region
    $region10: #{tpu_custom_call.1} parent=1 // pred_check
      _
    $region11: #{tpu_custom_call.1} parent=1 // pred_check_branch
      %41 = sbr.rel (0) target = $region13
    $region12: #{tpu_custom_call.1} parent=1 // pred_region
      %43 = dma.done [#allocation4], 16
    $region13: #{tpu_custom_call.1} parent=1 // pred_fallthru
      _
    // Predicated region
    $region14: #{tpu_custom_call.1} parent=1 // pred_check
      _
    $region15: #{tpu_custom_call.1} parent=1 // pred_check_branch
      %45 = sbr.rel (0) target = $region17
    $region16: #{tpu_custom_call.1} parent=1 // pred_region
      %47 = dma.done [#allocation7], 16
    $region17: #{tpu_custom_call.1} parent=1 // pred_fallthru
      _
    %s48 = sadd.s32 0, 0
    %p49 = scmp.lt.s32.totalorder %s48, 0
    %s50 = scalar_select %p49, %s48, 0
    %s51 = sadd.s32 0, 0
    %p52 = scmp.lt.s32.totalorder %s51, 0
    %s53 = scalar_select %p52, %s51, 0
    %p54 = scmp.eq.s32.totalorder 0, 0
    // Predicated region
    $region18: #{tpu_custom_call.1} parent=1 // pred_check
      %p55 = pneg %p54
    $region19: #{tpu_custom_call.1} parent=1 // pred_check_branch
      %57 = sbr.rel (%p55) target = $region21
    $region20: #{tpu_custom_call.1} parent=1 // pred_region
      %58 = vst [vmem:[#allocation2] sm:$0x1] 0.0
    $region21: #{tpu_custom_call.1} parent=1 // pred_fallthru
      _
    %v59 = vld [vmem:[#allocation3] sm:$0x1]
    %v60 = vld [vmem:[#allocation6] sm:$0x1]
    %v61 = vunpack.c.0.s8 %v60
    %v62 = vcvt.s32.f32 %v61
    %v63 = vsub.f32 %v59, %v62
    %v64 = vmul.f32 %v63, %v63
    %v65 = vsub.f32 0.0, %v64
    %v66 = vmul.f32 %v65, 1.442695
    %v67 = vpow.pop %v66
    %v68 = vsub.f32 1.0, %v67
    %v69 = vmul.f32 %v68, %v68
    %v70 = vld [vmem:[#allocation2] sm:$0x1]
    %v71 = vmul.f32 %v69, %v64
    %v72 = vadd.f32 %v70, %v71
    %73 = vst [vmem:[#allocation2] sm:$0x1] %v72
    // Predicated region
    $region22: #{tpu_custom_call.1} parent=1 // pred_check
      %p74 = pneg %p54
    $region23: #{tpu_custom_call.1} parent=1 // pred_check_branch
      %76 = sbr.rel (%p74) target = $region25
    $region24: #{tpu_custom_call.1} parent=1 // pred_region
      %v77 = vld [vmem:[#allocation2] sm:$0x1]
      %vm78 = vcmask 1040384
      %v79 = vsel %vm78, %v77, 0.0
      %80 = vadd.xlane.f32.xlu0 %v79
      %v81 = vpop.xlane.xlu0 %80
      %v82 = vrot.slane %v81, 4
      %v83 = vadd.f32 %v81, %v82
      %v84 = vrot.slane %v83, 2
      %v85 = vadd.f32 %v83, %v84
      %v86 = vrot.slane %v85, 1
      %v87 = vadd.f32 %v85, %v86
      %s88 = vtos %v87
      %v89 = vstv %s88
      %90 = vst [vmem:[#allocation8] sm:$0xff] %v89
    $region25: #{tpu_custom_call.1} parent=1 // pred_fallthru
      _
    // Predicated region
    $region26: #{tpu_custom_call.1} parent=1 // pred_check
      _
    $region27: #{tpu_custom_call.1} parent=1 // pred_check_branch
      %92 = sbr.rel (0) target = $region29
    $region28: #{tpu_custom_call.1} parent=1 // pred_region
      %94 = vsyncadd [#allocation5], 0
      %s96 = sshll.u32 [#allocation8], 4
      %s97 = int_to_ptr.vmem [resolvable:$true] %s96
      %s98 = sshll.u32 %s2, 4
      %s99 = int_to_ptr.hbm [resolvable:$true] %s98
      %101 = dma.vmem_to_hbm [thread:$0]  %s97, 128, %s99, [#allocation5]
    $region29: #{tpu_custom_call.1} parent=1 // pred_fallthru
      _
    // Predicated region
    $region30: #{tpu_custom_call.1} parent=1 // pred_check
      _
    $region31: #{tpu_custom_call.1} parent=1 // pred_check_branch
      %103 = sbr.rel (0) target = $region33
    $region32: #{tpu_custom_call.1} parent=1 // pred_region
      %105 = dma.done [#allocation5], 128
    $region33: #{tpu_custom_call.1} parent=1 // pred_fallthru
      _
    %106 = vsyncpa [#allocation4], 1
    %107 = vsyncpa [#allocation7], 1
    %108 = vsyncpa [#allocation5], 1

</llo_original>
